<compile_context>
chip_gen: v5e
topology: v5e:2x2
jax: 0.10.0
libtpu: 0.0.40
codegen_flags: <defaults>
</compile_context>

<pallas_src>
import functools

import jax
import jax.numpy as jnp
from jax.experimental import pallas as pl
from jax.experimental.pallas import tpu as pltpu

SUB = 8  # TPU sublane width; small feature dims are padded to a multiple of this.


def _round_up(x, m):
    return ((x + m - 1) // m) * m


def _num_tensorcores():
    """Best-effort TensorCores-per-device (v7x has 2; v5e/v6e have 1)."""
    try:
        d = jax.devices()[0]
        for attr in ("num_cores", "core_count"):
            n = getattr(d, attr, None)
            if isinstance(n, int) and n >= 1:
                return n
    except Exception:
        pass
    return 1


def _network_kernel(x_ref, w1_ref, b1_ref, w2_ref, b2_ref, out_ref):
    # One batch tile; all operands 8/128-aligned and resident in VMEM.
    x = x_ref[...]  # [block_b, IN_P] f32

    # fc1 + ReLU (MXU matmul, f32 accumulation; bias is a [1, H_P] row).
    h = jnp.dot(x, w1_ref[...], preferred_element_type=jnp.float32) + b1_ref[...]
    h = jnp.maximum(h, 0.0)

    # fc2 -> [block_b, A_P] store (A_P = round_up(nb_actions, 8)).
    out_ref[...] = (
        jnp.dot(h, w2_ref[...], preferred_element_type=jnp.float32) + b2_ref[...]
    )


def prepare_params(w1, b1, w2, b2):
    """One-time glue: transpose PyTorch-layout weights to [in, out] and
    zero-pad the streamed dims (input features, actions) to a multiple of 8
    sublanes; the resident hidden dim is padded to 128 lanes.

    w1: [hidden, in_size]   b1: [hidden]
    w2: [nb_actions, hidden]  b2: [nb_actions]
    """
    hidden, in_size = w1.shape
    nb_actions = w2.shape[0]
    in_p = _round_up(in_size, SUB)       # 5  -> 8   (activation stream)
    h_p = _round_up(hidden, 128)         # 30 -> 128 (resident, lane-aligned)
    a_p = _round_up(nb_actions, SUB)     # 3  -> 8   (output stream)

    w1p = jnp.zeros((in_p, h_p), jnp.float32).at[:in_size, :hidden].set(w1.T)
    b1p = jnp.zeros((1, h_p), jnp.float32).at[0, :hidden].set(b1)
    w2p = jnp.zeros((h_p, a_p), jnp.float32).at[:hidden, :nb_actions].set(w2.T)
    b2p = jnp.zeros((1, a_p), jnp.float32).at[0, :nb_actions].set(b2)
    return {
        "w1p": w1p, "b1p": b1p, "w2p": w2p, "b2p": b2p,
        "in_size": in_size, "nb_actions": nb_actions,
    }


def _choose_block_b(B, max_block_b, num_tc):
    """Static batch-tiling decision.

    - multiple of 8 always (8,128 tiling rule), regardless of max_block_b
    - single maximal tile on 1-TC chips (grid steps are pure serial overhead)
    - split into num_tc balanced tiles on multi-TC chips when B is big enough
    """
    b8 = _round_up(B, SUB)
    if num_tc > 1 and b8 >= num_tc * SUB:
        target = _round_up(-(-b8 // num_tc), SUB)   # even split across TCs
    else:
        target = b8
    block_b = min(max_block_b, target)
    block_b = max(SUB, (block_b // SUB) * SUB)
    b_pad = _round_up(b8, block_b)
    return block_b, b_pad


@functools.partial(
    jax.jit, static_argnames=("in_size", "nb_actions", "max_block_b", "num_tc")
)
def _forward_impl(state, w1p, b1p, w2p, b2p, *, in_size, nb_actions,
                  max_block_b, num_tc):
    B = state.shape[0]
    in_p = w1p.shape[0]
    h_p = w1p.shape[1]
    a_p = w2p.shape[1]

    block_b, b_pad = _choose_block_b(B, max_block_b, num_tc)

    x = state
    if b_pad != B or in_p != in_size:
        x = jnp.pad(state, ((0, b_pad - B), (0, in_p - in_size)))

    out = pl.pallas_call(
        _network_kernel,
        out_shape=jax.ShapeDtypeStruct((b_pad, a_p), jnp.float32),
        grid=(b_pad // block_b,),
        in_specs=[
            pl.BlockSpec((block_b, in_p), lambda i: (i, 0)),  # activation stream
            pl.BlockSpec((in_p, h_p), lambda i: (0, 0)),      # weights stay resident
            pl.BlockSpec((1, h_p), lambda i: (0, 0)),
            pl.BlockSpec((h_p, a_p), lambda i: (0, 0)),
            pl.BlockSpec((1, a_p), lambda i: (0, 0)),
        ],
        out_specs=pl.BlockSpec((block_b, a_p), lambda i: (i, 0)),
        compiler_params=pltpu.CompilerParams(
            dimension_semantics=("parallel",),  # v7x: both TCs split the batch
        ),
    )(x, w1p, b1p, w2p, b2p)

    # Padded action columns are exactly 0 (zero w2 cols / b2); never consume
    # them before this slice (e.g. an argmax over all a_p lanes would be wrong).
    return out[:B, :nb_actions]


def network_forward(state, params, *, max_block_b=2048, num_batch_shards=None):
    """Forward pass of Network.

    state:  [B, input_size] float32
    params: dict from prepare_params()
    returns q_values: [B, nb_actions] float32
    """
    num_tc = num_batch_shards if num_batch_shards is not None else _num_tensorcores()
    return _forward_impl(
        state,
        params["w1p"], params["b1p"], params["w2p"], params["b2p"],
        in_size=params["in_size"],
        nb_actions=params["nb_actions"],
        max_block_b=max_block_b,
        num_tc=int(num_tc),
    )


def init_params(key, input_size, nb_actions, hidden=30):
    """nn.Linear-style init: uniform(-1/sqrt(fan_in), 1/sqrt(fan_in))."""
    k1, k2, k3, k4 = jax.random.split(key, 4)
    bound1 = 1.0 / jnp.sqrt(jnp.float32(input_size))
    bound2 = 1.0 / jnp.sqrt(jnp.float32(hidden))
    w1 = jax.random.uniform(k1, (hidden, input_size), jnp.float32, -bound1, bound1)
    b1 = jax.random.uniform(k2, (hidden,), jnp.float32, -bound1, bound1)
    w2 = jax.random.uniform(k3, (nb_actions, hidden), jnp.float32, -bound2, bound2)
    b2 = jax.random.uniform(k4, (nb_actions,), jnp.float32, -bound2, bound2)
    return w1, b1, w2, b2


def _reference(state, w1, b1, w2, b2):
    return jnp.maximum(state @ w1.T + b1, 0.0) @ w2.T + b2


if __name__ == "__main__":
    # Self-driving-car agent: input_size=5 (3 sensors + orientation,
    # -orientation), nb_actions=3.
    input_size = 5
    nb_actions = 3

    key = jax.random.PRNGKey(0)
    k_params, k_small, k_big = jax.random.split(key, 3)
    w1, b1, w2, b2 = init_params(k_params, input_size, nb_actions)
    params = prepare_params(w1, b1, w2, b2)

    # Small batch (single-state / small replay style) -> one tile, grid=1.
    state_small = jax.random.normal(k_small, (8, input_size), jnp.float32)
    q_small = jax.block_until_ready(network_forward(state_small, params))
    assert q_small.shape == (8, nb_actions)
    assert jnp.allclose(q_small, _reference(state_small, w1, b1, w2, b2),
                        atol=1e-5, rtol=1e-5)

    # Larger, non-multiple-of-8 batch with a small max_block_b: exercises batch
    # padding, forced 8-multiple block_b, and the multi-tile "parallel" grid.
    state_big = jax.random.normal(k_big, (200, input_size), jnp.float32)
    q_big = jax.block_until_ready(
        network_forward(state_big, params, max_block_b=100)  # -> block_b=96
    )
    assert q_big.shape == (200, nb_actions)
    assert jnp.allclose(q_big, _reference(state_big, w1, b1, w2, b2),
                        atol=1e-5, rtol=1e-5)

    # TODO(synk): optional fused argmax-over-actions output for the B=1
    # action-selection path (would need lane masking for cols >= nb_actions).

    print("KERNEL_OK")
</pallas_src>

<mosaic_0001>
module attributes {stable_mosaic.version = 11 : i64} {
  func.func @_network_kernel(%arg0: i32, %arg1: memref<8x8xf32, #tpu.memory_space<vmem>>, %arg2: memref<8x128xf32, #tpu.memory_space<vmem>>, %arg3: memref<1x128xf32, #tpu.memory_space<vmem>>, %arg4: memref<128x8xf32, #tpu.memory_space<vmem>>, %arg5: memref<1x8xf32, #tpu.memory_space<vmem>>, %arg6: memref<8x8xf32, #tpu.memory_space<vmem>>) attributes {dimension_semantics = [#tpu.dimension_semantics<parallel>], iteration_bounds = array<i64: 1>, scalar_prefetch = 0 : i64, scratch_operands = 0 : i64, tpu.core_type = #tpu.core_type<tc>, window_params = [{transform_indices = @transform_0, window_bounds = array<i64: 8, 8>}, {pipeline_mode = #tpu.pipeline_mode<synchronous>, transform_indices = @transform_1, window_bounds = array<i64: 8, 128>}, {pipeline_mode = #tpu.pipeline_mode<synchronous>, transform_indices = @transform_2, window_bounds = array<i64: 1, 128>}, {pipeline_mode = #tpu.pipeline_mode<synchronous>, transform_indices = @transform_3, window_bounds = array<i64: 128, 8>}, {pipeline_mode = #tpu.pipeline_mode<synchronous>, transform_indices = @transform_4, window_bounds = array<i64: 1, 8>}, {transform_indices = @transform_5, window_bounds = array<i64: 8, 8>}]} {
    %c0 = arith.constant 0 : index
    %c0_0 = arith.constant 0 : index
    %0 = vector.load %arg1[%c0, %c0_0] : memref<8x8xf32, #tpu.memory_space<vmem>>, vector<8x8xf32>
    %c0_1 = arith.constant 0 : index
    %c0_2 = arith.constant 0 : index
    %1 = vector.load %arg2[%c0_1, %c0_2] : memref<8x128xf32, #tpu.memory_space<vmem>>, vector<8x128xf32>
    %cst = arith.constant dense<0.000000e+00> : vector<8x128xf32>
    %2 = tpu.matmul %0, %1, %cst {dimension_numbers = #tpu.dot_dimension_numbers<[1], [0], [0], [1], [0, 0, 1, 1], [], []>} : vector<8x8xf32>, vector<8x128xf32>, vector<8x128xf32> -> vector<8x128xf32>
    %c0_3 = arith.constant 0 : index
    %c0_4 = arith.constant 0 : index
    %3 = vector.load %arg3[%c0_3, %c0_4] : memref<1x128xf32, #tpu.memory_space<vmem>>, vector<1x128xf32>
    %4 = vector.broadcast %3 : vector<1x128xf32> to vector<8x128xf32>
    %5 = arith.addf %2, %4 : vector<8x128xf32>
    %cst_5 = arith.constant 0.000000e+00 : f32
    %6 = vector.broadcast %cst_5 : f32 to vector<8x128xf32>
    %7 = arith.maximumf %5, %6 : vector<8x128xf32>
    %c0_6 = arith.constant 0 : index
    %c0_7 = arith.constant 0 : index
    %8 = vector.load %arg4[%c0_6, %c0_7] : memref<128x8xf32, #tpu.memory_space<vmem>>, vector<128x8xf32>
    %cst_8 = arith.constant dense<0.000000e+00> : vector<8x8xf32>
    %9 = tpu.matmul %7, %8, %cst_8 {dimension_numbers = #tpu.dot_dimension_numbers<[1], [0], [0], [1], [0, 0, 1, 1], [], []>} : vector<8x128xf32>, vector<128x8xf32>, vector<8x8xf32> -> vector<8x8xf32>
    %c0_9 = arith.constant 0 : index
    %c0_10 = arith.constant 0 : index
    %10 = vector.load %arg5[%c0_9, %c0_10] : memref<1x8xf32, #tpu.memory_space<vmem>>, vector<1x8xf32>
    %11 = vector.broadcast %10 : vector<1x8xf32> to vector<8x8xf32>
    %12 = arith.addf %9, %11 : vector<8x8xf32>
    %c0_11 = arith.constant 0 : index
    %c0_12 = arith.constant 0 : index
    %13 = vector.load %arg6[%c0_11, %c0_12] : memref<8x8xf32, #tpu.memory_space<vmem>>, vector<8x8xf32>
    tpu.vector_store %arg6[%c0_11, %c0_12], %12 {strides = array<i32>} : memref<8x8xf32, #tpu.memory_space<vmem>>, vector<8x8xf32>,
    return
  }
  func.func @transform_0(%arg0: i32) -> (i32, i32) {
    %c0_i32 = arith.constant 0 : i32
    %c0_i32_0 = arith.constant 0 : i32
    return %arg0, %c0_i32 : i32, i32
  }
  func.func @transform_1(%arg0: i32) -> (i32, i32) {
    %c0_i32 = arith.constant 0 : i32
    %c0_i32_0 = arith.constant 0 : i32
    %c0_i32_1 = arith.constant 0 : i32
    return %c0_i32, %c0_i32_0 : i32, i32
  }
  func.func @transform_2(%arg0: i32) -> (i32, i32) {
    %c0_i32 = arith.constant 0 : i32
    %c0_i32_0 = arith.constant 0 : i32
    %c0_i32_1 = arith.constant 0 : i32
    return %c0_i32, %c0_i32_0 : i32, i32
  }
  func.func @transform_3(%arg0: i32) -> (i32, i32) {
    %c0_i32 = arith.constant 0 : i32
    %c0_i32_0 = arith.constant 0 : i32
    %c0_i32_1 = arith.constant 0 : i32
    return %c0_i32, %c0_i32_0 : i32, i32
  }
  func.func @transform_4(%arg0: i32) -> (i32, i32) {
    %c0_i32 = arith.constant 0 : i32
    %c0_i32_0 = arith.constant 0 : i32
    %c0_i32_1 = arith.constant 0 : i32
    return %c0_i32, %c0_i32_0 : i32, i32
  }
  func.func @transform_5(%arg0: i32) -> (i32, i32) {
    %c0_i32 = arith.constant 0 : i32
    %c0_i32_0 = arith.constant 0 : i32
    return %arg0, %c0_i32 : i32, i32
  }
}

</mosaic_0001>

<llo_original>
// kernel: _forward_impl.1
$region0: #{_forward_impl.1}
  #allocation0 [shape = 'u32[]', space=smem, size = 0x4, offset = 0x4, fixed_abs, tag = 'smem constant byte address 0x4 - core index']
  #allocation1 [shape = 'u32[72,128]{1,0:T(1,128)}', space=vmem, size = 0x9000, scoped, tag = 'internal scratch']
  %s0 = inlined_call_operand.vmem [shape: f32[8,8], index: 0, kind: input, shape index: {}]
  %s1 = inlined_call_operand.vmem [shape: f32[8,128], index: 1, kind: input, shape index: {}]
  %s2 = inlined_call_operand.vmem [shape: f32[1,128], index: 2, kind: input, shape index: {}]
  %s3 = inlined_call_operand.vmem [shape: f32[128,8], index: 3, kind: input, shape index: {}]
  %s4 = inlined_call_operand.vmem [shape: f32[1,8], index: 4, kind: input, shape index: {}]
  %s5 = inlined_call_operand.vmem [shape: f32[8,8], index: 5, kind: output, shape index: {}]
  %s6 = sld [smem:[#allocation0]]
  $region30: #{_forward_impl.1} parent=0
    _
  %s8 = ssub.s32 1, %s6
  %s9 = scalar_select 0, %s8, %s6
  // Predicated region
  $region2: #{_forward_impl.1} parent=0 // pred_check
    _
  $region3: #{_forward_impl.1} parent=0 // pred_check_branch
    %11 = sbr.rel (0) target = $region5
  $region4: #{_forward_impl.1} parent=0 // pred_region
    _
  $region5: #{_forward_impl.1} parent=0 // pred_fallthru
    _
  // Predicated region
  $region6: #{_forward_impl.1} parent=0 // pred_check
    _
  $region7: #{_forward_impl.1} parent=0 // pred_check_branch
    %13 = sbr.rel (0) target = $region9
  $region8: #{_forward_impl.1} parent=0 // pred_region
    _
  $region9: #{_forward_impl.1} parent=0 // pred_fallthru
    _
  // Predicated region
  $region10: #{_forward_impl.1} parent=0 // pred_check
    _
  $region11: #{_forward_impl.1} parent=0 // pred_check_branch
    %15 = sbr.rel (0) target = $region13
  $region12: #{_forward_impl.1} parent=0 // pred_region
    _
  $region13: #{_forward_impl.1} parent=0 // pred_fallthru
    _
  // Predicated region
  $region14: #{_forward_impl.1} parent=0 // pred_check
    _
  $region15: #{_forward_impl.1} parent=0 // pred_check_branch
    %17 = sbr.rel (0) target = $region17
  $region16: #{_forward_impl.1} parent=0 // pred_region
    _
  $region17: #{_forward_impl.1} parent=0 // pred_fallthru
    _
  // Predicated region
  $region18: #{_forward_impl.1} parent=0 // pred_check
    _
  $region19: #{_forward_impl.1} parent=0 // pred_check_branch
    %19 = sbr.rel (0) target = $region21
  $region20: #{_forward_impl.1} parent=0 // pred_region
    _
  $region21: #{_forward_impl.1} parent=0 // pred_fallthru
    _
  %v20 = vld [vmem:[%s0] sm:$0xff]
  %v21 = vld [vmem:[%s1] sm:$0xff]
  %v22 = vld [vmem:[%s2] sm:$0x1]
  %v24 = vperm.slane %v22, 0
  %vm26 = vcmask 64512
  %v28 = vsel %vm26, %v20, 0
  %30 = vmatpush.msra.mxu0 0.0
  %31 = vmatpush.msra.mxu0 0.0
  %32 = vmatpush.msra.mxu0 0.0
  %33 = vmatpush.msra.mxu0 0.0
  %34 = vmatpush.msra.mxu0 0.0
  %35 = vmatpush.msra.mxu0 0.0
  %36 = vmatpush.msra.mxu0 0.0
  %37 = vmatpush.msra.mxu0 0.0
  %38 = vmatpush.msra.mxu0 0.0
  %39 = vmatpush.msra.mxu0 0.0
  %40 = vmatpush.msra.mxu0 0.0
  %41 = vmatpush.msra.mxu0 0.0
  %42 = vmatpush.msra.mxu0 0.0
  %43 = vmatpush.msra.mxu0 0.0
  %44 = vmatpush.msra.mxu0 0.0
  %45 = vmatpush.msra.mxu0 %v21
  %46 = vmatmul.f32.gmra.mxu0 %v28
  %v47 = vpop.f32.mrf.mxu0
  %v48 = vadd.f32 %v24, %v47
  %49 = vdwg.mxu0
  %v50 = vmax.f32 %v48, 0.0
  %v51 = vld [vmem:[%s3] sm:$0xff]
  %v52 = vld [vmem:[%s3 + $0x8] sm:$0xff]
  %v53 = vld [vmem:[%s3 + $0x10] sm:$0xff]
  %v54 = vld [vmem:[%s3 + $0x18] sm:$0xff]
  %v55 = vld [vmem:[%s3 + $0x20] sm:$0xff]
  %v56 = vld [vmem:[%s3 + $0x28] sm:$0xff]
  %v57 = vld [vmem:[%s3 + $0x30] sm:$0xff]
  %v58 = vld [vmem:[%s3 + $0x38] sm:$0xff]
  %v59 = vld [vmem:[%s3 + $0x40] sm:$0xff]
  %v60 = vld [vmem:[%s3 + $0x48] sm:$0xff]
  %v61 = vld [vmem:[%s3 + $0x50] sm:$0xff]
  %v62 = vld [vmem:[%s3 + $0x58] sm:$0xff]
  %v63 = vld [vmem:[%s3 + $0x60] sm:$0xff]
  %v64 = vld [vmem:[%s3 + $0x68] sm:$0xff]
  %v65 = vld [vmem:[%s3 + $0x70] sm:$0xff]
  %v66 = vld [vmem:[%s3 + $0x78] sm:$0xff]
  %v67 = vld [vmem:[%s4] sm:$0x1]
  %v69 = vperm.slane %v67, 0
  %71 = vmatpush.msra.mxu0 %v66
  %72 = vmatpush.msra.mxu0 %v65
  %73 = vmatpush.msra.mxu0 %v64
  %74 = vmatpush.msra.mxu0 %v63
  %75 = vmatpush.msra.mxu0 %v62
  %76 = vmatpush.msra.mxu0 %v61
  %77 = vmatpush.msra.mxu0 %v60
  %78 = vmatpush.msra.mxu0 %v59
  %79 = vmatpush.msra.mxu0 %v58
  %80 = vmatpush.msra.mxu0 %v57
  %81 = vmatpush.msra.mxu0 %v56
  %82 = vmatpush.msra.mxu0 %v55
  %83 = vmatpush.msra.mxu0 %v54
  %84 = vmatpush.msra.mxu0 %v53
  %85 = vmatpush.msra.mxu0 %v52
  %86 = vmatpush.msra.mxu0 %v51
  %87 = vmatmul.f32.gmra.mxu0 %v50
  %v88 = vpop.f32.mrf.mxu0
  %v89 = vadd.f32 %v69, %v88
  %90 = vdwg.mxu0
  %91 = vst.msk [vmem:[%s5] sm:$0xff] %vm26, %v89
  // Predicated region
  $region22: #{_forward_impl.1} parent=0 // pred_check
    _
  $region23: #{_forward_impl.1} parent=0 // pred_check_branch
    %93 = sbr.rel (0) target = $region25
  $region24: #{_forward_impl.1} parent=0 // pred_region
    _
  $region25: #{_forward_impl.1} parent=0 // pred_fallthru
    _
  // Predicated region
  $region26: #{_forward_impl.1} parent=0 // pred_check
    _
  $region27: #{_forward_impl.1} parent=0 // pred_check_branch
    %95 = sbr.rel (0) target = $region29
  $region28: #{_forward_impl.1} parent=0 // pred_region
    _
  $region29: #{_forward_impl.1} parent=0 // pred_fallthru
    _

</llo_original>
